<compile_context>
chip_gen: v7x
topology: tpu7x:2x2x1
jax: 0.10.0
libtpu: 0.0.40
codegen_flags: <defaults>
</compile_context>

<pallas_src>
import functools

import jax
import jax.numpy as jnp
from jax.experimental import pallas as pl
from jax.experimental.pallas import tpu as pltpu

LANE = 128


def _round_up(x, m):
    return ((x + m - 1) // m) * m


def _gcn_spmm_gemm_kernel(adj_ref, h_ref, w_ref, b_ref, o_ref, acc_ref, *, deg_col):
    """Aggregate-first path: acc = adj @ h (bf16 MXU, f32 acc); epilogue (acc @ W) * in_norm + b."""
    k = pl.program_id(1)

    @pl.when(k == 0)
    def _init():
        acc_ref[...] = jnp.zeros_like(acc_ref)

    # bf16 x bf16 -> f32 on the native MXU path; adj 0/1 is exact in bf16.
    acc_ref[...] += jnp.dot(adj_ref[...], h_ref[...], preferred_element_type=jnp.float32)

    @pl.when(k == pl.num_programs(1) - 1)
    def _epilogue():
        acc = acc_ref[...]
        # Ones-column trick: column `deg_col` of acc holds the exact in-degree.
        in_norm = jax.lax.rsqrt(jnp.maximum(acc[:, deg_col:deg_col + 1], 1.0))
        rst = jnp.dot(acc, w_ref[...], preferred_element_type=jnp.float32)
        o_ref[...] = rst * in_norm + b_ref[...]


def _gcn_spmm_kernel(adj_ref, h_ref, b_ref, o_ref, *, deg_col):
    """Project-first path: h already = (x * out_norm) @ W; the output block is the accumulator."""
    k = pl.program_id(1)

    @pl.when(k == 0)
    def _init():
        o_ref[...] = jnp.zeros_like(o_ref)

    o_ref[...] += jnp.dot(adj_ref[...], h_ref[...], preferred_element_type=jnp.float32)

    @pl.when(k == pl.num_programs(1) - 1)
    def _epilogue():
        acc = o_ref[...]
        in_norm = jax.lax.rsqrt(jnp.maximum(acc[:, deg_col:deg_col + 1], 1.0))
        o_ref[...] = acc * in_norm + b_ref[...]


def dist_graph_conv(adj, local_feat, weight, bias, *, tm=1024, tk=1024):
    N_dst, N_src = adj.shape
    F_in = local_feat.shape[1]
    F_out = weight.shape[1]

    # Single bf16 cast of adj (0/1 -> exact); every further adj pass reads bf16 (half the bytes).
    adj_bf16 = adj if adj.dtype == jnp.bfloat16 else adj.astype(jnp.bfloat16)

    # Out-degree (left norm) is a cross-tile *column* reduction; tiny pre-pass on the bf16 slab
    # with f32 accumulation (exact for 0/1 entries).
    out_deg = jnp.maximum(jnp.sum(adj_bf16, axis=0, dtype=jnp.float32), 1.0)
    out_norm = jax.lax.rsqrt(out_deg)[:, None]                     # (N_src, 1)

    # DGL ordering heuristic: put the dense GEMM on whichever side is narrower so the streamed
    # feature width / VMEM accumulator use min(F_in, F_out).
    project_first = F_out < F_in
    if project_first:
        feat = jnp.dot(local_feat.astype(jnp.float32) * out_norm,
                       weight.astype(jnp.float32),
                       preferred_element_type=jnp.float32)         # (N_src, F_out)
        f_stream = F_out
    else:
        feat = local_feat.astype(jnp.float32) * out_norm           # left norm folded in here
        f_stream = F_in

    # --- tiling (multiples of the 128 lane width) ---
    tm = min(tm, _round_up(N_dst, LANE))
    # Keep >= 2 row tiles whenever possible so the "parallel" axis occupies both v7x TensorCores.
    tm = min(tm, max(LANE, _round_up((N_dst + 1) // 2, LANE)))
    tk = min(tk, _round_up(N_src, LANE))
    n_rows = _round_up(N_dst, tm)
    n_cols = _round_up(N_src, tk)
    grid = (n_rows // tm, n_cols // tk)

    # Reserve one extra column for the in-degree "ones" column even when f_stream % 128 == 0.
    f_p = _round_up(f_stream + 1, LANE)
    f_out_p = _round_up(F_out, LANE)
    out_w = f_p if project_first else f_out_p

    # Skip the padded adj copy entirely when the tiles divide N (one HBM read of adj total).
    if (n_rows, n_cols) != (N_dst, N_src):
        adj_p = jnp.zeros((n_rows, n_cols), jnp.bfloat16).at[:N_dst, :N_src].set(adj_bf16)
    else:
        adj_p = adj_bf16

    # bf16 feature slab with the norm pre-folded and the ones column for in-degree.
    feat_p = jnp.zeros((n_cols, f_p), jnp.bfloat16)
    feat_p = feat_p.at[:N_src, :f_stream].set(feat.astype(jnp.bfloat16))
    feat_p = feat_p.at[:N_src, f_stream].set(1.0)

    b_p = jnp.zeros((1, out_w), jnp.float32).at[0, :F_out].set(bias.astype(jnp.float32))

    # VMEM budget per generation: v7x 64 MiB/TC -> ~48 MiB, v5e/v6e 128 MiB -> up to 96 MiB.
    try:
        vmem_cap = pltpu.get_tpu_info().vmem_capacity_bytes
    except Exception:
        vmem_cap = 64 * 1024 * 1024
    vmem_limit = min((3 * vmem_cap) // 4, 96 * 1024 * 1024)

    compiler_params = pltpu.CompilerParams(
        dimension_semantics=("parallel", "arbitrary"),
        vmem_limit_bytes=vmem_limit,
    )

    if project_first:
        cost = pl.CostEstimate(
            flops=2 * n_rows * n_cols * f_p,
            transcendentals=n_rows,
            bytes_accessed=(n_rows * n_cols * 2                     # adj (bf16), one pass
                            + grid[0] * n_cols * f_p * 2            # bf16 features, once per row tile
                            + n_rows * f_p * 4                      # output
                            + f_p * 4),                             # bias
        )
        out_p = pl.pallas_call(
            functools.partial(_gcn_spmm_kernel, deg_col=f_stream),
            out_shape=jax.ShapeDtypeStruct((n_rows, f_p), jnp.float32),
            grid_spec=pltpu.PrefetchScalarGridSpec(
                num_scalar_prefetch=0,
                grid=grid,
                in_specs=[
                    pl.BlockSpec((tm, tk), lambda i, k: (i, k)),       # adj tile (bf16)
                    pl.BlockSpec((tk, f_p), lambda i, k: (k, 0)),      # (x*norm)@W tile (bf16)
                    pl.BlockSpec((1, out_w), lambda i, k: (0, 0)),     # bias (VMEM resident)
                ],
                out_specs=pl.BlockSpec((tm, f_p), lambda i, k: (i, 0)),
            ),
            compiler_params=compiler_params,
            cost_estimate=cost,
        )(adj_p, feat_p, b_p)
    else:
        w_p = jnp.zeros((f_p, f_out_p), jnp.float32).at[:F_in, :F_out].set(
            weight.astype(jnp.float32))
        cost = pl.CostEstimate(
            flops=2 * n_rows * n_cols * f_p + 2 * n_rows * f_p * f_out_p,
            transcendentals=n_rows,
            bytes_accessed=(n_rows * n_cols * 2
                            + grid[0] * n_cols * f_p * 2
                            + n_rows * f_out_p * 4
                            + (f_p * f_out_p + f_out_p) * 4),
        )
        out_p = pl.pallas_call(
            functools.partial(_gcn_spmm_gemm_kernel, deg_col=f_stream),
            out_shape=jax.ShapeDtypeStruct((n_rows, f_out_p), jnp.float32),
            grid_spec=pltpu.PrefetchScalarGridSpec(
                num_scalar_prefetch=0,
                grid=grid,
                in_specs=[
                    pl.BlockSpec((tm, tk), lambda i, k: (i, k)),           # adj tile (bf16)
                    pl.BlockSpec((tk, f_p), lambda i, k: (k, 0)),          # x*norm tile (bf16)
                    pl.BlockSpec((f_p, f_out_p), lambda i, k: (0, 0)),     # weight (VMEM resident)
                    pl.BlockSpec((1, out_w), lambda i, k: (0, 0)),         # bias (VMEM resident)
                ],
                out_specs=pl.BlockSpec((tm, f_out_p), lambda i, k: (i, 0)),
                scratch_shapes=[pltpu.VMEM((tm, f_p), jnp.float32)],       # f32 accumulator
            ),
            compiler_params=compiler_params,
            cost_estimate=cost,
        )(adj_p, feat_p, w_p, b_p)

    rst = out_p[:N_dst, :F_out]
    # single partition: new_part_size is just [F_out]
    new_part_size = jnp.array([F_out], dtype=jnp.int32)
    return rst, new_part_size


def _reference(adj, x, w, b):
    out_deg = jnp.maximum(adj.sum(axis=0), 1.0)
    in_deg = jnp.maximum(adj.sum(axis=1), 1.0)
    h = x * (out_deg ** -0.5)[:, None]
    agg = jnp.dot(adj, h, precision=jax.lax.Precision.HIGHEST)
    rst = jnp.dot(agg, w, precision=jax.lax.Precision.HIGHEST)
    return rst * (in_deg ** -0.5)[:, None] + b[None, :]


if __name__ == "__main__":
    key = jax.random.PRNGKey(0)
    k_adj, k_feat, k_w = jax.random.split(key, 3)

    N = 256          # nodes in the (single) partition
    in_feats = 16
    out_feats = 32

    # Dense adjacency: adj[v, u] = 1 iff edge u -> v.
    adj = (jax.random.uniform(k_adj, (N, N)) < 0.25).astype(jnp.float32)
    local_feat = jax.random.normal(k_feat, (N, in_feats), dtype=jnp.float32)

    # Deterministic parameter init matching reset_parameters(): xavier_uniform_ weight, zero bias.
    bound = (6.0 / (in_feats + out_feats)) ** 0.5
    weight = jax.random.uniform(
        k_w, (in_feats, out_feats), minval=-bound, maxval=bound, dtype=jnp.float32)
    bias = jnp.zeros((out_feats,), dtype=jnp.float32)

    # Small tiles so the demo exercises a real (2, 2) grid with the VMEM accumulator and
    # last-K epilogue (production defaults are tm=tk=1024).
    rst, new_part_size = dist_graph_conv(adj, local_feat, weight, bias, tm=128, tk=128)
    rst = jax.block_until_ready(rst)

    ref = _reference(adj, local_feat, weight, bias)
    assert rst.shape == (N, out_feats)
    err = jnp.max(jnp.abs(rst - ref))
    # bf16 feature stream (f32 accumulation) vs pure-f32 reference -> relaxed tolerance.
    assert jnp.allclose(rst, ref, atol=2e-2, rtol=2e-2), f"agg-first mismatch (max abs err {err})"

    # Second case exercises the project-first (F_out < F_in) kernel variant.
    weight2 = jax.random.uniform(
        k_w, (out_feats, in_feats), minval=-bound, maxval=bound, dtype=jnp.float32)
    feat2 = jax.random.normal(k_feat, (N, out_feats), dtype=jnp.float32)
    bias2 = jnp.zeros((in_feats,), dtype=jnp.float32)
    rst2, _ = dist_graph_conv(adj, feat2, weight2, bias2, tm=128, tk=128)
    rst2 = jax.block_until_ready(rst2)
    ref2 = _reference(adj, feat2, weight2, bias2)
    err2 = jnp.max(jnp.abs(rst2 - ref2))
    assert jnp.allclose(rst2, ref2, atol=2e-2, rtol=2e-2), \
        f"project-first mismatch (max abs err {err2})"

    print("KERNEL_OK")
</pallas_src>

<mosaic_0001>
module attributes {stable_mosaic.version = 11 : i64} {
  func.func @_gcn_spmm_gemm_kernel(%arg0: i32, %arg1: i32, %arg2: memref<128x128xbf16, #tpu.memory_space<vmem>>, %arg3: memref<128x128xbf16, #tpu.memory_space<vmem>>, %arg4: memref<128x128xf32, #tpu.memory_space<vmem>>, %arg5: memref<1x128xf32, #tpu.memory_space<vmem>>, %arg6: memref<128x128xf32, #tpu.memory_space<vmem>>, %arg7: memref<128x128xf32, #tpu.memory_space<vmem>>) attributes {dimension_semantics = [#tpu.dimension_semantics<parallel>, #tpu.dimension_semantics<arbitrary>], iteration_bounds = array<i64: 2, 2>, scalar_prefetch = 0 : i64, scratch_operands = 1 : i64, tpu.core_type = #tpu.core_type<tc>, window_params = [{transform_indices = @transform_0, window_bounds = array<i64: 128, 128>}, {transform_indices = @transform_1, window_bounds = array<i64: 128, 128>}, {pipeline_mode = #tpu.pipeline_mode<synchronous>, transform_indices = @transform_2, window_bounds = array<i64: 128, 128>}, {pipeline_mode = #tpu.pipeline_mode<synchronous>, transform_indices = @transform_3, window_bounds = array<i64: 1, 128>}, {transform_indices = @transform_4, window_bounds = array<i64: 128, 128>}]} {
    %c0_i32 = arith.constant 0 : i32
    %0 = arith.cmpi eq, %arg1, %c0_i32 : i32
    %1 = arith.extui %0 : i1 to i32
    %c0_i32_0 = arith.constant 0 : i32
    %2 = arith.cmpi ne, %1, %c0_i32_0 : i32
    scf.if %2 {
      %cst_9 = arith.constant 0.000000e+00 : f32
      %12 = vector.broadcast %cst_9 : f32 to vector<128x128xf32>
      %c0_10 = arith.constant 0 : index
      %c0_11 = arith.constant 0 : index
      %13 = vector.load %arg7[%c0_10, %c0_11] : memref<128x128xf32, #tpu.memory_space<vmem>>, vector<128x128xf32>
      tpu.vector_store %arg7[%c0_10, %c0_11], %12 {strides = array<i32>} : memref<128x128xf32, #tpu.memory_space<vmem>>, vector<128x128xf32>,
    } else {
    }
    %c0 = arith.constant 0 : index
    %c0_1 = arith.constant 0 : index
    %3 = vector.load %arg7[%c0, %c0_1] : memref<128x128xf32, #tpu.memory_space<vmem>>, vector<128x128xf32>
    %c0_2 = arith.constant 0 : index
    %c0_3 = arith.constant 0 : index
    %4 = vector.load %arg2[%c0_2, %c0_3] : memref<128x128xbf16, #tpu.memory_space<vmem>>, vector<128x128xbf16>
    %c0_4 = arith.constant 0 : index
    %c0_5 = arith.constant 0 : index
    %5 = vector.load %arg3[%c0_4, %c0_5] : memref<128x128xbf16, #tpu.memory_space<vmem>>, vector<128x128xbf16>
    %cst = arith.constant dense<0.000000e+00> : vector<128x128xf32>
    %6 = tpu.matmul %4, %5, %cst {dimension_numbers = #tpu.dot_dimension_numbers<[1], [0], [0], [1], [0, 0, 1, 1], [], []>} : vector<128x128xbf16>, vector<128x128xbf16>, vector<128x128xf32> -> vector<128x128xf32>
    %7 = arith.addf %3, %6 : vector<128x128xf32>
    %c0_6 = arith.constant 0 : index
    %c0_7 = arith.constant 0 : index
    %8 = vector.load %arg7[%c0_6, %c0_7] : memref<128x128xf32, #tpu.memory_space<vmem>>, vector<128x128xf32>
    tpu.vector_store %arg7[%c0_6, %c0_7], %7 {strides = array<i32>} : memref<128x128xf32, #tpu.memory_space<vmem>>, vector<128x128xf32>,
    %c1_i32 = arith.constant 1 : i32
    %9 = arith.cmpi eq, %arg1, %c1_i32 : i32
    %10 = arith.extui %9 : i1 to i32
    %c0_i32_8 = arith.constant 0 : i32
    %11 = arith.cmpi ne, %10, %c0_i32_8 : i32
    scf.if %11 {
      %c0_9 = arith.constant 0 : index
      %c0_10 = arith.constant 0 : index
      %12 = vector.load %arg7[%c0_9, %c0_10] : memref<128x128xf32, #tpu.memory_space<vmem>>, vector<128x128xf32>
      %13 = vector.extract_strided_slice %12 {offsets = [0, 16], sizes = [128, 1], strides = [1, 1]} : vector<128x128xf32> to vector<128x1xf32>
      %cst_11 = arith.constant 1.000000e+00 : f32
      %14 = vector.broadcast %cst_11 : f32 to vector<128x1xf32>
      %15 = arith.maximumf %13, %14 : vector<128x1xf32>
      %16 = math.rsqrt %15 : vector<128x1xf32>
      %c0_12 = arith.constant 0 : index
      %c0_13 = arith.constant 0 : index
      %17 = vector.load %arg4[%c0_12, %c0_13] : memref<128x128xf32, #tpu.memory_space<vmem>>, vector<128x128xf32>
      %cst_14 = arith.constant dense<0.000000e+00> : vector<128x128xf32>
      %18 = tpu.matmul %12, %17, %cst_14 {dimension_numbers = #tpu.dot_dimension_numbers<[1], [0], [0], [1], [0, 0, 1, 1], [], []>} : vector<128x128xf32>, vector<128x128xf32>, vector<128x128xf32> -> vector<128x128xf32>
      %19 = vector.broadcast %16 : vector<128x1xf32> to vector<128x128xf32>
      %20 = arith.mulf %18, %19 : vector<128x128xf32>
      %c0_15 = arith.constant 0 : index
      %c0_16 = arith.constant 0 : index
      %21 = vector.load %arg5[%c0_15, %c0_16] : memref<1x128xf32, #tpu.memory_space<vmem>>, vector<1x128xf32>
      %22 = vector.broadcast %21 : vector<1x128xf32> to vector<128x128xf32>
      %23 = arith.addf %20, %22 : vector<128x128xf32>
      %c0_17 = arith.constant 0 : index
      %c0_18 = arith.constant 0 : index
      %24 = vector.load %arg6[%c0_17, %c0_18] : memref<128x128xf32, #tpu.memory_space<vmem>>, vector<128x128xf32>
      tpu.vector_store %arg6[%c0_17, %c0_18], %23 {strides = array<i32>} : memref<128x128xf32, #tpu.memory_space<vmem>>, vector<128x128xf32>,
    } else {
    }
    return
  }
  func.func @transform_0(%arg0: i32, %arg1: i32) -> (i32, i32) {
    %c0_i32 = arith.constant 0 : i32
    return %arg0, %arg1 : i32, i32
  }
  func.func @transform_1(%arg0: i32, %arg1: i32) -> (i32, i32) {
    %c0_i32 = arith.constant 0 : i32
    %c0_i32_0 = arith.constant 0 : i32
    return %arg1, %c0_i32 : i32, i32
  }
  func.func @transform_2(%arg0: i32, %arg1: i32) -> (i32, i32) {
    %c0_i32 = arith.constant 0 : i32
    %c0_i32_0 = arith.constant 0 : i32
    %c0_i32_1 = arith.constant 0 : i32
    return %c0_i32, %c0_i32_0 : i32, i32
  }
  func.func @transform_3(%arg0: i32, %arg1: i32) -> (i32, i32) {
    %c0_i32 = arith.constant 0 : i32
    %c0_i32_0 = arith.constant 0 : i32
    %c0_i32_1 = arith.constant 0 : i32
    return %c0_i32, %c0_i32_0 : i32, i32
  }
  func.func @transform_4(%arg0: i32, %arg1: i32) -> (i32, i32) {
    %c0_i32 = arith.constant 0 : i32
    %c0_i32_0 = arith.constant 0 : i32
    return %arg0, %c0_i32 : i32, i32
  }
}

</mosaic_0001>

<llo_original>
// kernel: tpu_custom_call.1
$region0: #{tpu_custom_call.1}
  #allocation0 [shape = 'u32[]', space=smem, size = 0x4, offset = 0x4, fixed_abs, tag = 'smem constant byte address 0x4 - core index']
  #allocation1 [shape = 'u32[144,128]{1,0:T(1,128)}', space=vmem, size = 0x12000, scoped, tag = 'internal scratch']
  #allocation2 [shape = 'f32[128,128]{1,0:T(8,128)}', space=vmem, size = 0x10000, scoped, tag = 'scratch operand']
  %s0 = inlined_call_operand.hbm [shape: bf16[256,256], index: 0, kind: input, shape index: {}]
  %s1 = inlined_call_operand.hbm [shape: bf16[256,128], index: 1, kind: input, shape index: {}]
  %s2 = inlined_call_operand.hbm [shape: f32[128,128], index: 2, kind: input, shape index: {}]
  %s3 = inlined_call_operand.vmem [shape: f32[1,128], index: 3, kind: input, shape index: {}]
  %s4 = inlined_call_operand.hbm [shape: f32[256,128], index: 4, kind: output, shape index: {}]
  %s5 = sld [smem:[#allocation0]]
  $region69: #{tpu_custom_call.1} parent=0
    _
  %s7 = ssub.s32 1, %s5
  %s8 = scalar_select 0, %s7, %s5
  $region1: #{tpu_custom_call.1} parent=0
    #allocation3 [shape = 'u8[65536]{0}', space=vmem, size = 0x10000, scoped, tag = 'input window, operand 0']
    #allocation4 [shape = 's32[2]{0}', space=sflag, size = 0x8, scoped, tag = 'scoped memory for tpu_custom_call.1']
    #allocation5 [shape = 's32[2]{0}', space=sflag, size = 0x8, scoped, tag = 'scoped memory for tpu_custom_call.1']
    #allocation6 [shape = 'u8[65536]{0}', space=vmem, size = 0x10000, scoped, tag = 'input window, operand 1']
    #allocation7 [shape = 's32[2]{0}', space=sflag, size = 0x8, scoped, tag = 'scoped memory for tpu_custom_call.1']
    #allocation8 [shape = 'u8[65536]{0}', space=vmem, size = 0x10000, scoped, tag = 'input window, operand 2, single buffered']
    #allocation9 [shape = 'u8[131072]{0}', space=vmem, size = 0x20000, scoped, tag = 'output window, operand 0']
    %9 = vsyncpa [#allocation4], 0
    %s10 = scalar_lea.sflag [#allocation4], 1
    %11 = vsyncpa %s10, 0
    %12 = vsyncpa [#allocation7], 0
    %s13 = scalar_lea.sflag [#allocation7], 1
    %14 = vsyncpa %s13, 0
    %15 = vsyncpa [#allocation5], 0
    %s16 = scalar_lea.sflag [#allocation5], 1
    %17 = vsyncpa %s16, 0
    loop: start=0, step=1, limit=6
    $region2: #{tpu_custom_call.1} parent=1 // loop_pre_header
      _
    $region3: #{tpu_custom_call.1} parent=1 // loop_header
      %s19 = sphi 0, %s23
      %p20 = scmp.ge.s32.totalorder %s19, 6
      %s26 = sphi 0, %s38
      %s27 = sphi 0, %s34
      %s28 = sphi 0, %s26
      %s29 = sphi 0, %s27
      %s30 = sphi 0, %s28
      %s31 = sphi 0, %s29
      %s43 = sphi 0, %s45
      %s46 = sphi 0, %s43
      %s47 = sphi 0, %s46
      %s63 = sphi 0, %s47
      %s69 = sphi 0, %s71
      %s72 = sphi 0, %s69
      %s73 = sphi 0, %s72
      %s89 = sphi 0, %s73
      %s93 = sphi 0, %s93
      %s95 = sphi 0, %s93
      %s96 = sphi 0, %s95
      %s110 = sphi 0, %s96
      %s114 = sphi 0, %s114
      %s116 = sphi 0, %s114
      %s117 = sphi 0, %s116
      %s131 = sphi 0, %s117
      %s137 = sphi 0, %s139
      %s140 = sphi 0, %s137
      %s141 = sphi 0, %s140
      %s157 = sphi 0, %s141
    $region4: #{tpu_custom_call.1} parent=1 // loop_header_branch
      %22 = sbr.rel (%p20) target = $region8
    $region5: #{tpu_custom_call.1} parent=1 // loop_body
      %s24 = ssub.s32 %s19, 1
      %s25 = ssub.s32 %s19, 2
      %s32 = sadd.s32 1, %s27
      %p33 = scmp.ge.s32.totalorder %s32, 2
      %s34 = scalar_select %p33, 0, %s32
      %s35 = sadd.s32 1, %s26
      %s36 = scalar_select %p33, %s35, %s26
      %p37 = scmp.ge.s32.totalorder %s36, 2
      %s38 = scalar_select %p37, 0, %s36
      %s39 = ssub.s32 %s26, %s38
      %s40 = ssub.s32 %s27, %s34
      %s41 = sor.u32 %s39, %s40
      %p42 = scmp.eq.s32.totalorder %s41, 0
      %s44 = sadd.s32 %s43, 1
      %s45 = scalar_select %p42, %s43, %s44
      %p48 = pneg %p42
      %p49 = scmp.eq.s32.totalorder %s19, 3
      %p50 = por %p48, %p49
      %p51 = scmp.ne.s32.totalorder %s43, %s46
      %p52 = scmp.eq.s32.totalorder %s19, 0
      %p53 = por %p51, %p52
      %p54 = scmp.ne.s32.totalorder %s43, %s46
      %p55 = scmp.eq.s32.totalorder %s24, 3
      %p56 = por %p54, %p55
      %p57 = scmp.ne.s32.totalorder %s46, %s47
      %p58 = scmp.eq.s32.totalorder %s24, 0
      %p59 = por %p57, %p58
      %p60 = scmp.ne.s32.totalorder %s46, %s47
      %p61 = scmp.eq.s32.totalorder %s25, 3
      %p62 = por %p60, %p61
      %p64 = scmp.ne.s32.totalorder %s47, %s63
      %p65 = scmp.eq.s32.totalorder %s25, 0
      %p66 = por %p64, %p65
      %s67 = ssub.s32 %s27, %s34
      %p68 = scmp.eq.s32.totalorder %s67, 0
      %s70 = sadd.s32 %s69, 1
      %s71 = scalar_select %p68, %s69, %s70
      %p74 = pneg %p68
      %p75 = scmp.eq.s32.totalorder %s19, 3
      %p76 = por %p74, %p75
      %p77 = scmp.ne.s32.totalorder %s69, %s72
      %p78 = scmp.eq.s32.totalorder %s19, 0
      %p79 = por %p77, %p78
      %p80 = scmp.ne.s32.totalorder %s69, %s72
      %p81 = scmp.eq.s32.totalorder %s24, 3
      %p82 = por %p80, %p81
      %p83 = scmp.ne.s32.totalorder %s72, %s73
      %p84 = scmp.eq.s32.totalorder %s24, 0
      %p85 = por %p83, %p84
      %p86 = scmp.ne.s32.totalorder %s72, %s73
      %p87 = scmp.eq.s32.totalorder %s25, 3
      %p88 = por %p86, %p87
      %p90 = scmp.ne.s32.totalorder %s73, %s89
      %p91 = scmp.eq.s32.totalorder %s25, 0
      %p92 = por %p90, %p91
      %s94 = sadd.s32 %s93, 1
      %p97 = scmp.eq.s32.totalorder %s19, 3
      %p98 = scmp.ne.s32.totalorder %s93, %s95
      %p99 = scmp.eq.s32.totalorder %s19, 0
      %p100 = por %p98, %p99
      %p101 = scmp.ne.s32.totalorder %s93, %s95
      %p102 = scmp.eq.s32.totalorder %s24, 3
      %p103 = por %p101, %p102
      %p104 = scmp.ne.s32.totalorder %s95, %s96
      %p105 = scmp.eq.s32.totalorder %s24, 0
      %p106 = por %p104, %p105
      %p107 = scmp.ne.s32.totalorder %s95, %s96
      %p108 = scmp.eq.s32.totalorder %s25, 3
      %p109 = por %p107, %p108
      %p111 = scmp.ne.s32.totalorder %s96, %s110
      %p112 = scmp.eq.s32.totalorder %s25, 0
      %p113 = por %p111, %p112
      %s115 = sadd.s32 %s114, 1
      %p118 = scmp.eq.s32.totalorder %s19, 3
      %p119 = scmp.ne.s32.totalorder %s114, %s116
      %p120 = scmp.eq.s32.totalorder %s19, 0
      %p121 = por %p119, %p120
      %p122 = scmp.ne.s32.totalorder %s114, %s116
      %p123 = scmp.eq.s32.totalorder %s24, 3
      %p124 = por %p122, %p123
      %p125 = scmp.ne.s32.totalorder %s116, %s117
      %p126 = scmp.eq.s32.totalorder %s24, 0
      %p127 = por %p125, %p126
      %p128 = scmp.ne.s32.totalorder %s116, %s117
      %p129 = scmp.eq.s32.totalorder %s25, 3
      %p130 = por %p128, %p129
      %p132 = scmp.ne.s32.totalorder %s117, %s131
      %p133 = scmp.eq.s32.totalorder %s25, 0
      %p134 = por %p132, %p133
      %s135 = ssub.s32 %s26, %s38
      %p136 = scmp.eq.s32.totalorder %s135, 0
      %s138 = sadd.s32 %s137, 1
      %s139 = scalar_select %p136, %s137, %s138
      %p142 = pneg %p136
      %p143 = scmp.eq.s32.totalorder %s19, 3
      %p144 = por %p142, %p143
      %p145 = scmp.ne.s32.totalorder %s137, %s140
      %p146 = scmp.eq.s32.totalorder %s19, 0
      %p147 = por %p145, %p146
      %p148 = scmp.ne.s32.totalorder %s137, %s140
      %p149 = scmp.eq.s32.totalorder %s24, 3
      %p150 = por %p148, %p149
      %p151 = scmp.ne.s32.totalorder %s140, %s141
      %p152 = scmp.eq.s32.totalorder %s24, 0
      %p153 = por %p151, %p152
      %p154 = scmp.ne.s32.totalorder %s140, %s141
      %p155 = scmp.eq.s32.totalorder %s25, 3
      %p156 = por %p154, %p155
      %p158 = scmp.ne.s32.totalorder %s141, %s157
      %p159 = scmp.eq.s32.totalorder %s25, 0
      %p160 = por %p158, %p159
      %p161 = scmp.le.s32.totalorder 1, %s19
      %p162 = scmp.lt.s32.totalorder %s19, 5
      %p163 = pnand %p161, %p162
      %p164 = pneg %p163
      // Predicated region
      $region9: #{tpu_custom_call.1} parent=5 // pred_check
        _
      $region10: #{tpu_custom_call.1} parent=5 // pred_check_branch
        %166 = sbr.rel (%p163) target = $region12
      $region11: #{tpu_custom_call.1} parent=5 // pred_region
        %s167 = ssub.s32 %s19, 1
        // Predicated region
        $region13: #{tpu_custom_call.1} parent=11 // pred_check
          %p168 = pneg %p106
        $region14: #{tpu_custom_call.1} parent=11 // pred_check_branch
          %170 = sbr.rel (%p168) target = $region16
        $region15: #{tpu_custom_call.1} parent=11 // pred_region
          %s172 = ssub.s32 2048, 2048
          %173 = vsyncadd [#allocation7], %s172
          %s174 = sshll.u32 [#allocation8], 4
          %s175 = int_to_ptr.vmem [resolvable:$true] %s174
          %180 = dma.hbm_to_vmem [thread:$0]  %s2, 2048, %s175, [#allocation7], 128, 128, 8
        $region16: #{tpu_custom_call.1} parent=11 // pred_fallthru
          _
        // Predicated region
        $region17: #{tpu_custom_call.1} parent=11 // pred_check
          %p181 = pneg %p127
        $region18: #{tpu_custom_call.1} parent=11 // pred_check_branch
          %183 = sbr.rel (%p181) target = $region20
        $region19: #{tpu_custom_call.1} parent=11 // pred_region
          _
        $region20: #{tpu_custom_call.1} parent=11 // pred_fallthru
          _
      $region12: #{tpu_custom_call.1} parent=5 // pred_fallthru
        _
      %p184 = scmp.lt.s32.totalorder %s19, 4
      // Predicated region
      $region21: #{tpu_custom_call.1} parent=5 // pred_check
        %p185 = pneg %p184
      $region22: #{tpu_custom_call.1} parent=5 // pred_check_branch
        %187 = sbr.rel (%p185) target = $region24
      $region23: #{tpu_custom_call.1} parent=5 // pred_region
        // Predicated region
        $region25: #{tpu_custom_call.1} parent=23 // pred_check
          %p188 = pneg %p53
        $region26: #{tpu_custom_call.1} parent=23 // pred_check_branch
          %190 = sbr.rel (%p188) target = $region28
        $region27: #{tpu_custom_call.1} parent=23 // pred_region
          %s191 = sand.u32 %s43, 1
          %s192 = scalar_lea.sflag [#allocation4], %s191
          %s193 = sand.u32 %s43, 1
          %s194 = smul.addr %s193, 64
          %s195 = scalar_lea.vmem [#allocation3], %s194
          %s196 = smul.u32 16, %s26
          %s198 = ssub.s32 1024, 1024
          %199 = vsyncadd %s192, %s198
          %s200 = smul.addr %s196, 2
          %s201 = sadd.s32 %s27, %s200
          %s202 = smul.addr %s201, 64
          %s203 = scalar_lea.hbm %s0, %s202
          %s204 = sshll.u32 %s195, 4
          %s205 = int_to_ptr.vmem [resolvable:$true] %s204
          %210 = dma.hbm_to_vmem [thread:$0]  %s203, 1024, %s205, %s192, 128, 64, 4
        $region28: #{tpu_custom_call.1} parent=23 // pred_fallthru
          _
        // Predicated region
        $region29: #{tpu_custom_call.1} parent=23 // pred_check
          %p211 = pneg %p79
        $region30: #{tpu_custom_call.1} parent=23 // pred_check_branch
          %213 = sbr.rel (%p211) target = $region32
        $region31: #{tpu_custom_call.1} parent=23 // pred_region
          %s214 = sand.u32 %s19, 1
          %s215 = scalar_lea.sflag [#allocation7], %s214
          %s216 = sand.u32 %s69, 1
          %s217 = smul.addr %s216, 64
          %s218 = scalar_lea.vmem [#allocation6], %s217
          %s219 = smul.u32 16, %s27
          %s221 = ssub.s32 1024, 1024
          %222 = vsyncadd %s215, %s221
          %s223 = smul.addr %s219, 64
          %s224 = scalar_lea.hbm %s1, %s223
          %s225 = sshll.u32 %s218, 4
          %s226 = int_to_ptr.vmem [resolvable:$true] %s225
          %231 = dma.hbm_to_vmem [thread:$0]  %s224, 1024, %s226, %s215, 64, 64, 4
        $region32: #{tpu_custom_call.1} parent=23 // pred_fallthru
          _
      $region24: #{tpu_custom_call.1} parent=5 // pred_fallthru
        _
      %p232 = scmp.le.s32.totalorder 1, %s19
      %p233 = scmp.lt.s32.totalorder %s19, 5
      %p234 = pnand %p232, %p233
      %p235 = pneg %p234
      // Predicated region
      $region33: #{tpu_custom_call.1} parent=5 // pred_check
        _
      $region34: #{tpu_custom_call.1} parent=5 // pred_check_branch
        %237 = sbr.rel (%p234) target = $region36
      $region35: #{tpu_custom_call.1} parent=5 // pred_region
        %s238 = ssub.s32 %s19, 1
        %s239 = sand.u32 %s46, 1
        %s240 = scalar_lea.sflag [#allocation4], %s239
        %s241 = sand.u32 %s46, 1
        %s242 = smul.addr %s241, 64
        %s243 = scalar_lea.vmem [#allocation3], %s242
        // Predicated region
        $region37: #{tpu_custom_call.1} parent=35 // pred_check
          %p244 = pneg %p59
        $region38: #{tpu_custom_call.1} parent=35 // pred_check_branch
          %246 = sbr.rel (%p244) target = $region40
        $region39: #{tpu_custom_call.1} parent=35 // pred_region
          %247 = dma.done %s240, 1024
        $region40: #{tpu_custom_call.1} parent=35 // pred_fallthru
          _
        %s248 = sand.u32 %s24, 1
        %s249 = scalar_lea.sflag [#allocation7], %s248
        %s250 = sand.u32 %s72, 1
        %s251 = smul.addr %s250, 64
        %s252 = scalar_lea.vmem [#allocation6], %s251
        // Predicated region
        $region41: #{tpu_custom_call.1} parent=35 // pred_check
          %p253 = pneg %p85
        $region42: #{tpu_custom_call.1} parent=35 // pred_check_branch
          %255 = sbr.rel (%p253) target = $region44
        $region43: #{tpu_custom_call.1} parent=35 // pred_region
          %256 = dma.done %s249, 1024
        $region44: #{tpu_custom_call.1} parent=35 // pred_fallthru
          _
        // Predicated region
        $region45: #{tpu_custom_call.1} parent=35 // pred_check
          %p257 = pneg %p106
        $region46: #{tpu_custom_call.1} parent=35 // pred_check_branch
          %259 = sbr.rel (%p257) target = $region48
        $region47: #{tpu_custom_call.1} parent=35 // pred_region
          %260 = dma.done [#allocation7], 2048
        $region48: #{tpu_custom_call.1} parent=35 // pred_fallthru
          _
        %s261 = sand.u32 %s46, 1
        %s262 = scalar_lea.sflag [#allocation4], %s261
        %s263 = sand.u32 %s46, 1
        %s264 = smul.addr %s263, 64
        %s265 = scalar_lea.vmem [#allocation3], %s264
        %p266 = pneg %p59
        %p267 = pneg %p56
        %s268 = sand.u32 %s24, 1
        %s269 = scalar_lea.sflag [#allocation7], %s268
        %s270 = sand.u32 %s72, 1
        %s271 = smul.addr %s270, 64
        %s272 = scalar_lea.vmem [#allocation6], %s271
        %p273 = pneg %p85
        %p274 = pneg %p82
        %p275 = pneg %p106
        %p276 = pneg %p103
        %p277 = pneg %p127
        %p278 = pneg %p124
        %p279 = pneg %p153
        %p280 = pneg %p150
        %s281 = sand.u32 %s140, 1
        %s282 = scalar_lea.sflag [#allocation5], %s281
        %s283 = sand.u32 %s140, 1
        %s284 = smul.addr %s283, 128
        %s285 = scalar_lea.vmem [#allocation9], %s284
        %s286 = smul.u32 16, %s28
        %s287 = smul.u32 16, %s29
        %s288 = smul.u32 16, %s28
        %p290 = scmp.eq.s32.totalorder %s29, 0
        // Predicated region
        $region49: #{tpu_custom_call.1} parent=35 // pred_check
          %p291 = pneg %p290
        $region50: #{tpu_custom_call.1} parent=35 // pred_check_branch
          %293 = sbr.rel (%p291) target = $region52
        $region51: #{tpu_custom_call.1} parent=35 // pred_region
          %294 = vst [vmem:[#allocation2] sm:$0xff] 0.0
          %295 = vst [vmem:[#allocation2 + $0x8] sm:$0xff] 0.0
          %296 = vst [vmem:[#allocation2 + $0x10] sm:$0xff] 0.0
          %297 = vst [vmem:[#allocation2 + $0x18] sm:$0xff] 0.0
          %298 = vst [vmem:[#allocation2 + $0x20] sm:$0xff] 0.0
          %299 = vst [vmem:[#allocation2 + $0x28] sm:$0xff] 0.0
          %300 = vst [vmem:[#allocation2 + $0x30] sm:$0xff] 0.0
          %301 = vst [vmem:[#allocation2 + $0x38] sm:$0xff] 0.0
          %302 = vst [vmem:[#allocation2 + $0x40] sm:$0xff] 0.0
          %303 = vst [vmem:[#allocation2 + $0x48] sm:$0xff] 0.0
          %304 = vst [vmem:[#allocation2 + $0x50] sm:$0xff] 0.0
          %305 = vst [vmem:[#allocation2 + $0x58] sm:$0xff] 0.0
          %306 = vst [vmem:[#allocation2 + $0x60] sm:$0xff] 0.0
          %307 = vst [vmem:[#allocation2 + $0x68] sm:$0xff] 0.0
          %308 = vst [vmem:[#allocation2 + $0x70] sm:$0xff] 0.0
          %309 = vst [vmem:[#allocation2 + $0x78] sm:$0xff] 0.0
        $region52: #{tpu_custom_call.1} parent=35 // pred_fallthru
          _
        %v310 = vld [vmem:[#allocation2] sm:$0xff]
        %v311 = vld [vmem:[#allocation2 + $0x8] sm:$0xff]
        %v312 = vld [vmem:[#allocation2 + $0x10] sm:$0xff]
        %v313 = vld [vmem:[#allocation2 + $0x18] sm:$0xff]
        %v314 = vld [vmem:[#allocation2 + $0x20] sm:$0xff]
        %v315 = vld [vmem:[#allocation2 + $0x28] sm:$0xff]
        %v316 = vld [vmem:[#allocation2 + $0x30] sm:$0xff]
        %v317 = vld [vmem:[#allocation2 + $0x38] sm:$0xff]
        %v318 = vld [vmem:[#allocation2 + $0x40] sm:$0xff]
        %v319 = vld [vmem:[#allocation2 + $0x48] sm:$0xff]
        %v320 = vld [vmem:[#allocation2 + $0x50] sm:$0xff]
        %v321 = vld [vmem:[#allocation2 + $0x58] sm:$0xff]
        %v322 = vld [vmem:[#allocation2 + $0x60] sm:$0xff]
        %v323 = vld [vmem:[#allocation2 + $0x68] sm:$0xff]
        %v324 = vld [vmem:[#allocation2 + $0x70] sm:$0xff]
        %v325 = vld [vmem:[#allocation2 + $0x78] sm:$0xff]
        %v326 = vld [vmem:[%s243] sm:$0xf]
        %v327 = vld [vmem:[%s243 + $0x4] sm:$0xf]
        %v328 = vld [vmem:[%s243 + $0x8] sm:$0xf]
        %v329 = vld [vmem:[%s243 + $0xc] sm:$0xf]
        %v330 = vld [vmem:[%s243 + $0x10] sm:$0xf]
        %v331 = vld [vmem:[%s243 + $0x14] sm:$0xf]
        %v332 = vld [vmem:[%s243 + $0x18] sm:$0xf]
        %v333 = vld [vmem:[%s243 + $0x1c] sm:$0xf]
        %v334 = vld [vmem:[%s243 + $0x20] sm:$0xf]
        %v335 = vld [vmem:[%s243 + $0x24] sm:$0xf]
        %v336 = vld [vmem:[%s243 + $0x28] sm:$0xf]
        %v337 = vld [vmem:[%s243 + $0x2c] sm:$0xf]
        %v338 = vld [vmem:[%s243 + $0x30] sm:$0xf]
        %v339 = vld [vmem:[%s243 + $0x34] sm:$0xf]
        %v340 = vld [vmem:[%s243 + $0x38] sm:$0xf]
        %v341 = vld [vmem:[%s243 + $0x3c] sm:$0xf]
        %v342 = vld [vmem:[%s252] sm:$0xf]
        %v343 = vld [vmem:[%s252 + $0x4] sm:$0xf]
        %v344 = vld [vmem:[%s252 + $0x8] sm:$0xf]
        %v345 = vld [vmem:[%s252 + $0xc] sm:$0xf]
        %v346 = vld [vmem:[%s252 + $0x10] sm:$0xf]
        %v347 = vld [vmem:[%s252 + $0x14] sm:$0xf]
        %v348 = vld [vmem:[%s252 + $0x18] sm:$0xf]
        %v349 = vld [vmem:[%s252 + $0x1c] sm:$0xf]
        %v350 = vld [vmem:[%s252 + $0x20] sm:$0xf]
        %v351 = vld [vmem:[%s252 + $0x24] sm:$0xf]
        %v352 = vld [vmem:[%s252 + $0x28] sm:$0xf]
        %v353 = vld [vmem:[%s252 + $0x2c] sm:$0xf]
        %v354 = vld [vmem:[%s252 + $0x30] sm:$0xf]
        %v355 = vld [vmem:[%s252 + $0x34] sm:$0xf]
        %v356 = vld [vmem:[%s252 + $0x38] sm:$0xf]
        %v357 = vld [vmem:[%s252 + $0x3c] sm:$0xf]
        %v374 = vunpack.c.l.b16 %v326
        %v375 = vunpack.c.l.b16 %v327
        %v376 = vunpack.c.l.b16 %v328
        %v377 = vunpack.c.l.b16 %v329
        %v378 = vunpack.c.l.b16 %v330
        %v379 = vunpack.c.l.b16 %v331
        %v380 = vunpack.c.l.b16 %v332
        %v381 = vunpack.c.l.b16 %v333
        %v382 = vunpack.c.l.b16 %v334
        %v383 = vunpack.c.l.b16 %v335
        %v384 = vunpack.c.l.b16 %v336
        %v385 = vunpack.c.l.b16 %v337
        %v386 = vunpack.c.l.b16 %v338
        %v387 = vunpack.c.l.b16 %v339
        %v388 = vunpack.c.l.b16 %v340
        %v389 = vunpack.c.l.b16 %v341
        %v390 = vpack.c.b16 %v375, %v374
        %v391 = vpack.c.b16 %v377, %v376
        %v392 = vpack.c.b16 %v379, %v378
        %v393 = vpack.c.b16 %v381, %v380
        %v394 = vpack.c.b16 %v383, %v382
        %v395 = vpack.c.b16 %v385, %v384
        %v396 = vpack.c.b16 %v387, %v386
        %v397 = vpack.c.b16 %v389, %v388
        %v422 = vunpack.c.l.b16 %v342
        %v423 = vunpack.c.l.b16 %v343
        %v424 = vunpack.c.l.b16 %v344
        %v425 = vunpack.c.l.b16 %v345
        %v426 = vunpack.c.l.b16 %v346
        %v427 = vunpack.c.l.b16 %v347
        %v428 = vunpack.c.l.b16 %v348
        %v429 = vunpack.c.l.b16 %v349
        %v430 = vunpack.c.l.b16 %v350
        %v431 = vunpack.c.l.b16 %v351
        %v432 = vunpack.c.l.b16 %v352
        %v433 = vunpack.c.l.b16 %v353
        %v434 = vunpack.c.l.b16 %v354
        %v435 = vunpack.c.l.b16 %v355
        %v436 = vunpack.c.l.b16 %v356
        %v437 = vunpack.c.l.b16 %v357
        %v438 = vpack.c.b16 %v423, %v422
        %v439 = vpack.c.b16 %v425, %v424
        %v440 = vpack.c.b16 %v427, %v426
        %v441 = vpack.c.b16 %v429, %v428
        %v442 = vpack.c.b16 %v431, %v430
        %v443 = vpack.c.b16 %v433, %v432
        %v444 = vpack.c.b16 %v435, %v434
        %v445 = vpack.c.b16 %v437, %v436
        %454 = vmatprep.subr.bf16.mxu0 0
        %455 = vmatpush1.bf16.msra.mxu0 %v438
        %456 = vmatprep.subr.bf16.mxu0 0
        %457 = vmatpush1.bf16.msra.mxu0 %v439
        %458 = vmatprep.subr.bf16.mxu0 0
        %459 = vmatpush1.bf16.msra.mxu0 %v440
        %460 = vmatprep.subr.bf16.mxu0 0
        %461 = vmatpush1.bf16.msra.mxu0 %v441
        %462 = vmatprep.subr.bf16.mxu0 0
        %463 = vmatpush1.bf16.msra.mxu0 %v442
        %464 = vmatprep.subr.bf16.mxu0 0
        %465 = vmatpush1.bf16.msra.mxu0 %v443
        %466 = vmatprep.subr.bf16.mxu0 0
        %467 = vmatpush1.bf16.msra.mxu0 %v444
        %468 = vmatprep.subr.bf16.mxu0 0
        %469 = vmatpush1.bf16.msra.mxu0 %v445
        %470 = vmatprep.subr.bf16.mxu0 0
        %471 = vmatpush1.bf16.msra.mxu0 0
        %472 = vmatprep.subr.bf16.mxu0 0
        %473 = vmatpush1.bf16.msra.mxu0 0
        %474 = vmatprep.subr.bf16.mxu0 0
        %475 = vmatpush1.bf16.msra.mxu0 0
        %476 = vmatprep.subr.bf16.mxu0 0
        %477 = vmatpush1.bf16.msra.mxu0 0
        %478 = vmatprep.subr.bf16.mxu0 0
        %479 = vmatpush1.bf16.msra.mxu0 0
        %480 = vmatprep.subr.bf16.mxu0 0
        %481 = vmatpush1.bf16.msra.mxu0 0
        %482 = vmatprep.subr.bf16.mxu0 0
        %483 = vmatpush1.bf16.msra.mxu0 0
        %484 = vmatprep.subr.bf16.mxu0 0
        %485 = vmatpush1.bf16.msra.mxu0 0
        %486 = vmatprep.mubr.bf16.mxu0 0
        %487 = vmatmul.mubr.bf16.gmra.mrb[0].mxu0 %v390
        %v488 = vpop.f32.mrb[0].mxu0
        %v489 = vadd.f32 0.0, %v488
        %v490 = vpop.f32.mrb[0].mxu0
        %v491 = vpop.f32.mrb[0].mxu0
        %v492 = vadd.f32 0.0, %v491
        %v493 = vpop.f32.mrb[0].mxu0
        %494 = vmatprep.mubr.bf16.mxu0 0
        %495 = vmatmul.mubr.bf16.gmra.mrb[0].mxu0 %v391
        %v496 = vpop.f32.mrb[0].mxu0
        %v497 = vadd.f32 0.0, %v496
        %v498 = vpop.f32.mrb[0].mxu0
        %v499 = vpop.f32.mrb[0].mxu0
        %v500 = vadd.f32 0.0, %v499
        %v501 = vpop.f32.mrb[0].mxu0
        %502 = vmatprep.mubr.bf16.mxu0 0
        %503 = vmatmul.mubr.bf16.gmra.mrb[0].mxu0 %v392
        %v504 = vpop.f32.mrb[0].mxu0
        %v505 = vadd.f32 0.0, %v504
        %v506 = vpop.f32.mrb[0].mxu0
        %v507 = vpop.f32.mrb[0].mxu0
        %v508 = vadd.f32 0.0, %v507
        %v509 = vpop.f32.mrb[0].mxu0
        %510 = vmatprep.mubr.bf16.mxu0 0
        %511 = vmatmul.mubr.bf16.gmra.mrb[0].mxu0 %v393
        %v512 = vpop.f32.mrb[0].mxu0
        %v513 = vadd.f32 0.0, %v512
        %v514 = vpop.f32.mrb[0].mxu0
        %v515 = vpop.f32.mrb[0].mxu0
        %v516 = vadd.f32 0.0, %v515
        %v517 = vpop.f32.mrb[0].mxu0
        %518 = vmatprep.mubr.bf16.mxu0 0
        %519 = vmatmul.mubr.bf16.gmra.mrb[0].mxu0 %v394
        %v520 = vpop.f32.mrb[0].mxu0
        %v521 = vadd.f32 0.0, %v520
        %v522 = vpop.f32.mrb[0].mxu0
        %v523 = vpop.f32.mrb[0].mxu0
        %v524 = vadd.f32 0.0, %v523
        %v525 = vpop.f32.mrb[0].mxu0
        %526 = vmatprep.mubr.bf16.mxu0 0
        %527 = vmatmul.mubr.bf16.gmra.mrb[0].mxu0 %v395
        %v528 = vpop.f32.mrb[0].mxu0
        %v529 = vadd.f32 0.0, %v528
        %v530 = vpop.f32.mrb[0].mxu0
        %v531 = vpop.f32.mrb[0].mxu0
        %v532 = vadd.f32 0.0, %v531
        %v533 = vpop.f32.mrb[0].mxu0
        %534 = vmatprep.mubr.bf16.mxu0 0
        %535 = vmatmul.mubr.bf16.gmra.mrb[0].mxu0 %v396
        %v536 = vpop.f32.mrb[0].mxu0
        %v537 = vadd.f32 0.0, %v536
        %v538 = vpop.f32.mrb[0].mxu0
        %v539 = vpop.f32.mrb[0].mxu0
        %v540 = vadd.f32 0.0, %v539
        %v541 = vpop.f32.mrb[0].mxu0
        %542 = vmatprep.mubr.bf16.mxu0 0
        %543 = vmatmul.mubr.bf16.gmra.mrb[0].mxu0 %v397
        %v544 = vpop.f32.mrb[0].mxu0
        %v545 = vadd.f32 0.0, %v544
        %v546 = vpop.f32.mrb[0].mxu0
        %v547 = vpop.f32.mrb[0].mxu0
        %v548 = vadd.f32 0.0, %v547
        %v549 = vpop.f32.mrb[0].mxu0
        %550 = vdwg.mxu0
        %v551 = vadd.f32 %v310, %v489
        %v552 = vadd.f32 %v311, %v492
        %v553 = vadd.f32 %v312, %v497
        %v554 = vadd.f32 %v313, %v500
        %v555 = vadd.f32 %v314, %v505
        %v556 = vadd.f32 %v315, %v508
        %v557 = vadd.f32 %v316, %v513
        %v558 = vadd.f32 %v317, %v516
        %v559 = vadd.f32 %v318, %v521
        %v560 = vadd.f32 %v319, %v524
        %v561 = vadd.f32 %v320, %v529
        %v562 = vadd.f32 %v321, %v532
        %v563 = vadd.f32 %v322, %v537
        %v564 = vadd.f32 %v323, %v540
        %v565 = vadd.f32 %v324, %v545
        %v566 = vadd.f32 %v325, %v548
        %567 = vst [vmem:[#allocation2] sm:$0xff] %v551
        %568 = vst [vmem:[#allocation2 + $0x8] sm:$0xff] %v552
        %569 = vst [vmem:[#allocation2 + $0x10] sm:$0xff] %v553
        %570 = vst [vmem:[#allocation2 + $0x18] sm:$0xff] %v554
        %571 = vst [vmem:[#allocation2 + $0x20] sm:$0xff] %v555
        %572 = vst [vmem:[#allocation2 + $0x28] sm:$0xff] %v556
        %573 = vst [vmem:[#allocation2 + $0x30] sm:$0xff] %v557
        %574 = vst [vmem:[#allocation2 + $0x38] sm:$0xff] %v558
        %575 = vst [vmem:[#allocation2 + $0x40] sm:$0xff] %v559
        %576 = vst [vmem:[#allocation2 + $0x48] sm:$0xff] %v560
        %577 = vst [vmem:[#allocation2 + $0x50] sm:$0xff] %v561
        %578 = vst [vmem:[#allocation2 + $0x58] sm:$0xff] %v562
        %579 = vst [vmem:[#allocation2 + $0x60] sm:$0xff] %v563
        %580 = vst [vmem:[#allocation2 + $0x68] sm:$0xff] %v564
        %581 = vst [vmem:[#allocation2 + $0x70] sm:$0xff] %v565
        %582 = vst [vmem:[#allocation2 + $0x78] sm:$0xff] %v566
        %p583 = scmp.eq.s32.totalorder %s29, 1
        // Predicated region
        $region53: #{tpu_custom_call.1} parent=35 // pred_check
          %p584 = pneg %p583
        $region54: #{tpu_custom_call.1} parent=35 // pred_check_branch
          %586 = sbr.rel (%p584) target = $region56
        $region55: #{tpu_custom_call.1} parent=35 // pred_region
          %v587 = vld [vmem:[#allocation2] sm:$0xff]
          %v588 = vld [vmem:[#allocation2 + $0x8] sm:$0xff]
          %v589 = vld [vmem:[#allocation2 + $0x10] sm:$0xff]
          %v590 = vld [vmem:[#allocation2 + $0x18] sm:$0xff]
          %v591 = vld [vmem:[#allocation2 + $0x20] sm:$0xff]
          %v592 = vld [vmem:[#allocation2 + $0x28] sm:$0xff]
          %v593 = vld [vmem:[#allocation2 + $0x30] sm:$0xff]
          %v594 = vld [vmem:[#allocation2 + $0x38] sm:$0xff]
          %v595 = vld [vmem:[#allocation2 + $0x40] sm:$0xff]
          %v596 = vld [vmem:[#allocation2 + $0x48] sm:$0xff]
          %v597 = vld [vmem:[#allocation2 + $0x50] sm:$0xff]
          %v598 = vld [vmem:[#allocation2 + $0x58] sm:$0xff]
          %v599 = vld [vmem:[#allocation2 + $0x60] sm:$0xff]
          %v600 = vld [vmem:[#allocation2 + $0x68] sm:$0xff]
          %v601 = vld [vmem:[#allocation2 + $0x70] sm:$0xff]
          %v602 = vld [vmem:[#allocation2 + $0x78] sm:$0xff]
          %v603 = vmax.f32 %v587, 1.0
          %v604 = vmax.f32 %v588, 1.0
          %v605 = vmax.f32 %v589, 1.0
          %v606 = vmax.f32 %v590, 1.0
          %v607 = vmax.f32 %v591, 1.0
          %v608 = vmax.f32 %v592, 1.0
          %v609 = vmax.f32 %v593, 1.0
          %v610 = vmax.f32 %v594, 1.0
          %v611 = vmax.f32 %v595, 1.0
          %v612 = vmax.f32 %v596, 1.0
          %v613 = vmax.f32 %v597, 1.0
          %v614 = vmax.f32 %v598, 1.0
          %v615 = vmax.f32 %v599, 1.0
          %v616 = vmax.f32 %v600, 1.0
          %v617 = vmax.f32 %v601, 1.0
          %v618 = vmax.f32 %v602, 1.0
          %v619 = vrsqrt.pop %v603
          %v620 = vrsqrt.pop %v604
          %v621 = vrsqrt.pop %v605
          %v622 = vrsqrt.pop %v606
          %v623 = vrsqrt.pop %v607
          %v624 = vrsqrt.pop %v608
          %v625 = vrsqrt.pop %v609
          %v626 = vrsqrt.pop %v610
          %v627 = vrsqrt.pop %v611
          %v628 = vrsqrt.pop %v612
          %v629 = vrsqrt.pop %v613
          %v630 = vrsqrt.pop %v614
          %v631 = vrsqrt.pop %v615
          %v632 = vrsqrt.pop %v616
          %v633 = vrsqrt.pop %v617
          %v634 = vrsqrt.pop %v618
          %v635 = vld [vmem:[#allocation8] sm:$0xff]
          %v636 = vld [vmem:[#allocation8 + $0x8] sm:$0xff]
          %v637 = vld [vmem:[#allocation8 + $0x10] sm:$0xff]
          %v638 = vld [vmem:[#allocation8 + $0x18] sm:$0xff]
          %v639 = vld [vmem:[#allocation8 + $0x20] sm:$0xff]
          %v640 = vld [vmem:[#allocation8 + $0x28] sm:$0xff]
          %v641 = vld [vmem:[#allocation8 + $0x30] sm:$0xff]
          %v642 = vld [vmem:[#allocation8 + $0x38] sm:$0xff]
          %v643 = vld [vmem:[#allocation8 + $0x40] sm:$0xff]
          %v644 = vld [vmem:[#allocation8 + $0x48] sm:$0xff]
          %v645 = vld [vmem:[#allocation8 + $0x50] sm:$0xff]
          %v646 = vld [vmem:[#allocation8 + $0x58] sm:$0xff]
          %v647 = vld [vmem:[#allocation8 + $0x60] sm:$0xff]
          %v648 = vld [vmem:[#allocation8 + $0x68] sm:$0xff]
          %v649 = vld [vmem:[#allocation8 + $0x70] sm:$0xff]
          %v650 = vld [vmem:[#allocation8 + $0x78] sm:$0xff]
          %651 = vmatprep.subr.mxu0 0.0
          %652 = vmatpush1.msra.mxu0 %v635
          %653 = vmatprep.subr.mxu0 0.0
          %654 = vmatpush1.msra.mxu0 %v636
          %655 = vmatprep.subr.mxu0 0.0
          %656 = vmatpush1.msra.mxu0 %v637
          %657 = vmatprep.subr.mxu0 0.0
          %658 = vmatpush1.msra.mxu0 %v638
          %659 = vmatprep.subr.mxu0 0.0
          %660 = vmatpush1.msra.mxu0 %v639
          %661 = vmatprep.subr.mxu0 0.0
          %662 = vmatpush1.msra.mxu0 %v640
          %663 = vmatprep.subr.mxu0 0.0
          %664 = vmatpush1.msra.mxu0 %v641
          %665 = vmatprep.subr.mxu0 0.0
          %666 = vmatpush1.msra.mxu0 %v642
          %667 = vmatprep.subr.mxu0 0.0
          %668 = vmatpush1.msra.mxu0 %v643
          %669 = vmatprep.subr.mxu0 0.0
          %670 = vmatpush1.msra.mxu0 %v644
          %671 = vmatprep.subr.mxu0 0.0
          %672 = vmatpush1.msra.mxu0 %v645
          %673 = vmatprep.subr.mxu0 0.0
          %674 = vmatpush1.msra.mxu0 %v646
          %675 = vmatprep.subr.mxu0 0.0
          %676 = vmatpush1.msra.mxu0 %v647
          %677 = vmatprep.subr.mxu0 0.0
          %678 = vmatpush1.msra.mxu0 %v648
          %679 = vmatprep.subr.mxu0 0.0
          %680 = vmatpush1.msra.mxu0 %v649
          %681 = vmatprep.subr.mxu0 0.0
          %682 = vmatpush1.msra.mxu0 %v650
          %683 = vmatprep.subr.mxu0 0.0
          %684 = vmatpush1.msra.mxu0 0.0
          %685 = vmatprep.subr.mxu0 0.0
          %686 = vmatpush1.msra.mxu0 0.0
          %687 = vmatprep.subr.mxu0 0.0
          %688 = vmatpush1.msra.mxu0 0.0
          %689 = vmatprep.subr.mxu0 0.0
          %690 = vmatpush1.msra.mxu0 0.0
          %691 = vmatprep.subr.mxu0 0.0
          %692 = vmatpush1.msra.mxu0 0.0
          %693 = vmatprep.subr.mxu0 0.0
          %694 = vmatpush1.msra.mxu0 0.0
          %695 = vmatprep.subr.mxu0 0.0
          %696 = vmatpush1.msra.mxu0 0.0
          %697 = vmatprep.subr.mxu0 0.0
          %698 = vmatpush1.msra.mxu0 0.0
          %699 = vmatprep.subr.mxu0 0.0
          %700 = vmatpush1.msra.mxu0 0.0
          %701 = vmatprep.subr.mxu0 0.0
          %702 = vmatpush1.msra.mxu0 0.0
          %703 = vmatprep.subr.mxu0 0.0
          %704 = vmatpush1.msra.mxu0 0.0
          %705 = vmatprep.subr.mxu0 0.0
          %706 = vmatpush1.msra.mxu0 0.0
          %707 = vmatprep.subr.mxu0 0.0
          %708 = vmatpush1.msra.mxu0 0.0
          %709 = vmatprep.subr.mxu0 0.0
          %710 = vmatpush1.msra.mxu0 0.0
          %711 = vmatprep.subr.mxu0 0.0
          %712 = vmatpush1.msra.mxu0 0.0
          %713 = vmatprep.subr.mxu0 0.0
          %714 = vmatpush1.msra.mxu0 0.0
          %715 = vmatprep.mubr.f32.mxu0 0.0
          %716 = vmatmul.mubr.f32.gmra.mrb[0].mxu0 %v587
          %v717 = vpop.f32.mrb[0].mxu0
          %v718 = vadd.f32 0.0, %v717
          %v719 = vpop.f32.mrb[0].mxu0
          %720 = vmatprep.mubr.f32.mxu0 0.0
          %721 = vmatmul.mubr.f32.gmra.mrb[0].mxu0 %v588
          %v722 = vpop.f32.mrb[0].mxu0
          %v723 = vadd.f32 0.0, %v722
          %v724 = vpop.f32.mrb[0].mxu0
          %725 = vmatprep.mubr.f32.mxu0 0.0
          %726 = vmatmul.mubr.f32.gmra.mrb[0].mxu0 %v589
          %v727 = vpop.f32.mrb[0].mxu0
          %v728 = vadd.f32 0.0, %v727
          %v729 = vpop.f32.mrb[0].mxu0
          %730 = vmatprep.mubr.f32.mxu0 0.0
          %731 = vmatmul.mubr.f32.gmra.mrb[0].mxu0 %v590
          %v732 = vpop.f32.mrb[0].mxu0
          %v733 = vadd.f32 0.0, %v732
          %v734 = vpop.f32.mrb[0].mxu0
          %735 = vmatprep.mubr.f32.mxu0 0.0
          %736 = vmatmul.mubr.f32.gmra.mrb[0].mxu0 %v591
          %v737 = vpop.f32.mrb[0].mxu0
          %v738 = vadd.f32 0.0, %v737
          %v739 = vpop.f32.mrb[0].mxu0
          %740 = vmatprep.mubr.f32.mxu0 0.0
          %741 = vmatmul.mubr.f32.gmra.mrb[0].mxu0 %v592
          %v742 = vpop.f32.mrb[0].mxu0
          %v743 = vadd.f32 0.0, %v742
          %v744 = vpop.f32.mrb[0].mxu0
          %745 = vmatprep.mubr.f32.mxu0 0.0
          %746 = vmatmul.mubr.f32.gmra.mrb[0].mxu0 %v593
          %v747 = vpop.f32.mrb[0].mxu0
          %v748 = vadd.f32 0.0, %v747
          %v749 = vpop.f32.mrb[0].mxu0
          %750 = vmatprep.mubr.f32.mxu0 0.0
          %751 = vmatmul.mubr.f32.gmra.mrb[0].mxu0 %v594
          %v752 = vpop.f32.mrb[0].mxu0
          %v753 = vadd.f32 0.0, %v752
          %v754 = vpop.f32.mrb[0].mxu0
          %755 = vmatprep.mubr.f32.mxu0 0.0
          %756 = vmatmul.mubr.f32.gmra.mrb[0].mxu0 %v595
          %v757 = vpop.f32.mrb[0].mxu0
          %v758 = vadd.f32 0.0, %v757
          %v759 = vpop.f32.mrb[0].mxu0
          %760 = vmatprep.mubr.f32.mxu0 0.0
          %761 = vmatmul.mubr.f32.gmra.mrb[0].mxu0 %v596
          %v762 = vpop.f32.mrb[0].mxu0
          %v763 = vadd.f32 0.0, %v762
          %v764 = vpop.f32.mrb[0].mxu0
          %765 = vmatprep.mubr.f32.mxu0 0.0
          %766 = vmatmul.mubr.f32.gmra.mrb[0].mxu0 %v597
          %v767 = vpop.f32.mrb[0].mxu0
          %v768 = vadd.f32 0.0, %v767
          %v769 = vpop.f32.mrb[0].mxu0
          %770 = vmatprep.mubr.f32.mxu0 0.0
          %771 = vmatmul.mubr.f32.gmra.mrb[0].mxu0 %v598
          %v772 = vpop.f32.mrb[0].mxu0
          %v773 = vadd.f32 0.0, %v772
          %v774 = vpop.f32.mrb[0].mxu0
          %775 = vmatprep.mubr.f32.mxu0 0.0
          %776 = vmatmul.mubr.f32.gmra.mrb[0].mxu0 %v599
          %v777 = vpop.f32.mrb[0].mxu0
          %v778 = vadd.f32 0.0, %v777
          %v779 = vpop.f32.mrb[0].mxu0
          %780 = vmatprep.mubr.f32.mxu0 0.0
          %781 = vmatmul.mubr.f32.gmra.mrb[0].mxu0 %v600
          %v782 = vpop.f32.mrb[0].mxu0
          %v783 = vadd.f32 0.0, %v782
          %v784 = vpop.f32.mrb[0].mxu0
          %785 = vmatprep.mubr.f32.mxu0 0.0
          %786 = vmatmul.mubr.f32.gmra.mrb[0].mxu0 %v601
          %v787 = vpop.f32.mrb[0].mxu0
          %v788 = vadd.f32 0.0, %v787
          %v789 = vpop.f32.mrb[0].mxu0
          %790 = vmatprep.mubr.f32.mxu0 0.0
          %791 = vmatmul.mubr.f32.gmra.mrb[0].mxu0 %v602
          %v792 = vpop.f32.mrb[0].mxu0
          %v793 = vadd.f32 0.0, %v792
          %v794 = vpop.f32.mrb[0].mxu0
          %795 = vdwg.mxu0
          %797 = vset.pattern.permute.xlu0 16
          %798 = vperm.xlu0 %797, %v619
          %v799 = vpop.permute.xlu0 %798
          %802 = vset.pattern.permute.xlu0 16
          %803 = vperm.xlu0 %802, %v620
          %v804 = vpop.permute.xlu0 %803
          %807 = vset.pattern.permute.xlu0 16
          %808 = vperm.xlu0 %807, %v621
          %v809 = vpop.permute.xlu0 %808
          %812 = vset.pattern.permute.xlu0 16
          %813 = vperm.xlu0 %812, %v622
          %v814 = vpop.permute.xlu0 %813
          %817 = vset.pattern.permute.xlu0 16
          %818 = vperm.xlu0 %817, %v623
          %v819 = vpop.permute.xlu0 %818
          %822 = vset.pattern.permute.xlu0 16
          %823 = vperm.xlu0 %822, %v624
          %v824 = vpop.permute.xlu0 %823
          %827 = vset.pattern.permute.xlu0 16
          %828 = vperm.xlu0 %827, %v625
          %v829 = vpop.permute.xlu0 %828
          %832 = vset.pattern.permute.xlu0 16
          %833 = vperm.xlu0 %832, %v626
          %v834 = vpop.permute.xlu0 %833
          %837 = vset.pattern.permute.xlu0 16
          %838 = vperm.xlu0 %837, %v627
          %v839 = vpop.permute.xlu0 %838
          %842 = vset.pattern.permute.xlu0 16
          %843 = vperm.xlu0 %842, %v628
          %v844 = vpop.permute.xlu0 %843
          %847 = vset.pattern.permute.xlu0 16
          %848 = vperm.xlu0 %847, %v629
          %v849 = vpop.permute.xlu0 %848
          %852 = vset.pattern.permute.xlu0 16
          %853 = vperm.xlu0 %852, %v630
          %v854 = vpop.permute.xlu0 %853
          %857 = vset.pattern.permute.xlu0 16
          %858 = vperm.xlu0 %857, %v631
          %v859 = vpop.permute.xlu0 %858
          %862 = vset.pattern.permute.xlu0 16
          %863 = vperm.xlu0 %862, %v632
          %v864 = vpop.permute.xlu0 %863
          %867 = vset.pattern.permute.xlu0 16
          %868 = vperm.xlu0 %867, %v633
          %v869 = vpop.permute.xlu0 %868
          %872 = vset.pattern.permute.xlu0 16
          %873 = vperm.xlu0 %872, %v634
          %v874 = vpop.permute.xlu0 %873
          %v876 = vmul.f32 %v718, %v799
          %v877 = vmul.f32 %v723, %v804
          %v878 = vmul.f32 %v728, %v809
          %v879 = vmul.f32 %v733, %v814
          %v880 = vmul.f32 %v738, %v819
          %v881 = vmul.f32 %v743, %v824
          %v882 = vmul.f32 %v748, %v829
          %v883 = vmul.f32 %v753, %v834
          %v884 = vmul.f32 %v758, %v839
          %v885 = vmul.f32 %v763, %v844
          %v886 = vmul.f32 %v768, %v849
          %v887 = vmul.f32 %v773, %v854
          %v888 = vmul.f32 %v778, %v859
          %v889 = vmul.f32 %v783, %v864
          %v890 = vmul.f32 %v788, %v869
          %v891 = vmul.f32 %v793, %v874
          %v892 = vld [vmem:[%s3] sm:$0x1]
          %v894 = vlaneseq
          %v895 = vshrl.u32 %v894, 7
          %v896 = vsub.s32 0, %v895
          %v897 = vrot.slane %v892, %v896
          %v899 = vadd.f32 %v876, %v897
          %v900 = vadd.f32 %v877, %v897
          %v901 = vadd.f32 %v878, %v897
          %v902 = vadd.f32 %v879, %v897
          %v903 = vadd.f32 %v880, %v897
          %v904 = vadd.f32 %v881, %v897
          %v905 = vadd.f32 %v882, %v897
          %v906 = vadd.f32 %v883, %v897
          %v907 = vadd.f32 %v884, %v897
          %v908 = vadd.f32 %v885, %v897
          %v909 = vadd.f32 %v886, %v897
          %v910 = vadd.f32 %v887, %v897
          %v911 = vadd.f32 %v888, %v897
          %v912 = vadd.f32 %v889, %v897
          %v913 = vadd.f32 %v890, %v897
          %v914 = vadd.f32 %v891, %v897
          %915 = vst [vmem:[%s285] sm:$0xff] %v899
          %916 = vst [vmem:[%s285 + $0x8] sm:$0xff] %v900
          %917 = vst [vmem:[%s285 + $0x10] sm:$0xff] %v901
          %918 = vst [vmem:[%s285 + $0x18] sm:$0xff] %v902
          %919 = vst [vmem:[%s285 + $0x20] sm:$0xff] %v903
          %920 = vst [vmem:[%s285 + $0x28] sm:$0xff] %v904
          %921 = vst [vmem:[%s285 + $0x30] sm:$0xff] %v905
          %922 = vst [vmem:[%s285 + $0x38] sm:$0xff] %v906
          %923 = vst [vmem:[%s285 + $0x40] sm:$0xff] %v907
          %924 = vst [vmem:[%s285 + $0x48] sm:$0xff] %v908
          %925 = vst [vmem:[%s285 + $0x50] sm:$0xff] %v909
          %926 = vst [vmem:[%s285 + $0x58] sm:$0xff] %v910
          %927 = vst [vmem:[%s285 + $0x60] sm:$0xff] %v911
          %928 = vst [vmem:[%s285 + $0x68] sm:$0xff] %v912
          %929 = vst [vmem:[%s285 + $0x70] sm:$0xff] %v913
          %930 = vst [vmem:[%s285 + $0x78] sm:$0xff] %v914
        $region56: #{tpu_custom_call.1} parent=35 // pred_fallthru
          _
        %s931 = sand.u32 %s140, 1
        %s932 = scalar_lea.sflag [#allocation5], %s931
        %s933 = sand.u32 %s140, 1
        %s934 = smul.addr %s933, 128
        %s935 = scalar_lea.vmem [#allocation9], %s934
        // Predicated region
        $region57: #{tpu_custom_call.1} parent=35 // pred_check
          %p936 = pneg %p150
        $region58: #{tpu_custom_call.1} parent=35 // pred_check_branch
          %938 = sbr.rel (%p936) target = $region60
        $region59: #{tpu_custom_call.1} parent=35 // pred_region
          %s939 = smul.u32 16, %s28
          %s941 = ssub.s32 2048, 2048
          %942 = vsyncadd %s932, %s941
          %s943 = smul.addr %s939, 128
          %s944 = scalar_lea.hbm %s4, %s943
          %s945 = sshll.u32 %s935, 4
          %s946 = int_to_ptr.vmem [resolvable:$true] %s945
          %951 = dma.vmem_to_hbm [thread:$0]  %s946, 2048, %s944, %s932, 128, 128, 8
        $region60: #{tpu_custom_call.1} parent=35 // pred_fallthru
          _
      $region36: #{tpu_custom_call.1} parent=5 // pred_fallthru
        _
      %p952 = scmp.le.s32.totalorder 2, %s19
      // Predicated region
      $region61: #{tpu_custom_call.1} parent=5 // pred_check
        %p953 = pneg %p952
      $region62: #{tpu_custom_call.1} parent=5 // pred_check_branch
        %955 = sbr.rel (%p953) target = $region64
      $region63: #{tpu_custom_call.1} parent=5 // pred_region
        %s956 = ssub.s32 %s19, 2
        // Predicated region
        $region65: #{tpu_custom_call.1} parent=63 // pred_check
          %p957 = pneg %p156
        $region66: #{tpu_custom_call.1} parent=63 // pred_check_branch
          %959 = sbr.rel (%p957) target = $region68
        $region67: #{tpu_custom_call.1} parent=63 // pred_region
          %s960 = sand.u32 %s141, 1
          %s961 = scalar_lea.sflag [#allocation5], %s960
          %s962 = sand.u32 %s141, 1
          %s963 = smul.addr %s962, 128
          %s964 = scalar_lea.vmem [#allocation9], %s963
          %965 = dma.done %s961, 2048
        $region68: #{tpu_custom_call.1} parent=63 // pred_fallthru
          _
      $region64: #{tpu_custom_call.1} parent=5 // pred_fallthru
        _
    $region6: #{tpu_custom_call.1} parent=1 // loop_footer
      %s23 = sadd.s32 1, %s19
    $region7: #{tpu_custom_call.1} parent=1 // loop_footer_branch
      %18 = sbr.rel target = $region3
    $region8: #{tpu_custom_call.1} parent=1 // loop_exit
      _
    %966 = vsyncpa [#allocation4], 1
    %s967 = scalar_lea.sflag [#allocation4], 1
    %968 = vsyncpa %s967, 1
    %969 = vsyncpa [#allocation7], 1
    %s970 = scalar_lea.sflag [#allocation7], 1
    %971 = vsyncpa %s970, 1
    %972 = vsyncpa [#allocation5], 1
    %s973 = scalar_lea.sflag [#allocation5], 1
    %974 = vsyncpa %s973, 1

</llo_original>
